<compile_context>
chip_gen: v7x
topology: tpu7x:2x2x1
jax: 0.10.0
libtpu: 0.0.40
codegen_flags: <defaults>
</compile_context>

<pallas_src>
import functools

import jax
import jax.numpy as jnp
from jax.experimental import pallas as pl
from jax.experimental.pallas import tpu as pltpu

_LN_EPS = 1e-5            # torch.nn.LayerNorm default
_MAX_BLOCK_B = 1024       # per-tile batch cap (keeps activations comfortably in VMEM)
_FUSED_MAX_2H = 256       # keep block-diagonal fused weights only while 2H <= this


def _round_up(n, m):
    return ((n + m - 1) // m) * m


def _layernorm(h, gamma, beta):
    """Biased-variance LayerNorm (torch semantics). Used by reference AND kernel."""
    mu = jnp.mean(h, axis=-1, keepdims=True)
    d = h - mu
    var = jnp.mean(d * d, axis=-1, keepdims=True)
    return d * jax.lax.rsqrt(var + _LN_EPS) * gamma + beta


# ----------------------------------------------------------------------------
# Pure-JAX reference (unfused, per critic) for correctness checking.
# ----------------------------------------------------------------------------
def critic_reference(x, params, num_hidden, norm):
    h = x
    idx = 0
    for _ in range(num_hidden):
        w, b = params[idx], params[idx + 1]
        idx += 2
        h = h @ w + b
        if norm:
            g, be = params[idx], params[idx + 1]
            idx += 2
            h = _layernorm(h, g, be)
        h = jnp.maximum(h, 0.0)
    return h @ params[idx] + params[idx + 1]


def init_critic_params(key, in_dim, hidden_dims, norm):
    """Params mirroring torch defaults: Linear ~ U(-1/sqrt(fan_in), +), LN gamma=1,
    beta=0. Weights stored as [in, out], biases / LN params as [1, out]."""
    params = []
    dims = [in_dim] + list(hidden_dims)
    for i in range(len(hidden_dims)):
        key, kw, kb = jax.random.split(key, 3)
        bound = 1.0 / float(dims[i]) ** 0.5
        w = jax.random.uniform(kw, (dims[i], dims[i + 1]), jnp.float32, -bound, bound)
        b = jax.random.uniform(kb, (1, dims[i + 1]), jnp.float32, -bound, bound)
        params += [w, b]
        if norm:
            params += [
                jnp.ones((1, dims[i + 1]), jnp.float32),
                jnp.zeros((1, dims[i + 1]), jnp.float32),
            ]
    key, kw, kb = jax.random.split(key, 3)
    bound = 1.0 / float(hidden_dims[-1]) ** 0.5
    w = jax.random.uniform(kw, (hidden_dims[-1], 1), jnp.float32, -bound, bound)
    b = jax.random.uniform(kb, (1, 1), jnp.float32, -bound, bound)
    params += [w, b]
    return params


# ----------------------------------------------------------------------------
# Packing: two per-critic param lists -> a handful of fused arrays.
# ----------------------------------------------------------------------------
def pack_double_q_params(q1_params, q2_params, hidden_dims, norm,
                         weight_dtype=jnp.float32):
    """Packs both critics' parameters.

    Fused layout (2H <= 256): layer-0 weight (in, 2H), hidden weights block-diagonal
    (L-1, 2H, 2H), all per-layer vectors in one (n_rows, 2H) f32 array, head weight
    (2H, 2) with w1 in column 0 / w2 in column 1, head bias (1, 2).

    Split layout (2H > 256): no zero blocks -- (2, in, H), (L-1, 2, H, H),
    (2, n_rows, H), (2, H, 1), (1, 2).
    LN / bias vectors always stay f32; only matmul weights take weight_dtype.
    """
    L = len(hidden_dims)
    H = hidden_dims[0]
    assert all(h == H for h in hidden_dims), "fused kernel assumes uniform hidden dims"
    split = 2 * H > _FUSED_MAX_2H
    stride = 4 if norm else 2

    def layer(params, l):
        base = l * stride
        return (params[base], params[base + 1],
                params[base + 2] if norm else None,
                params[base + 3] if norm else None)

    w1_out, b1_out = q1_params[-2], q1_params[-1]   # (H,1), (1,1)
    w2_out, b2_out = q2_params[-2], q2_params[-1]
    b_head = jnp.concatenate([b1_out, b2_out], axis=1).astype(jnp.float32)   # (1,2)

    if split:
        w0 = jnp.stack([layer(q1_params, 0)[0], layer(q2_params, 0)[0]],
                       axis=0).astype(weight_dtype)                          # (2,in,H)
        wh = None
        if L > 1:
            wh = jnp.stack(
                [jnp.stack([layer(q1_params, l)[0], layer(q2_params, l)[0]], axis=0)
                 for l in range(1, L)], axis=0).astype(weight_dtype)         # (L-1,2,H,H)

        def crit_vecs(params):
            rows = [layer(params, l)[1] for l in range(L)]
            if norm:
                rows += [layer(params, l)[2] for l in range(L)]
                rows += [layer(params, l)[3] for l in range(L)]
            return jnp.concatenate(rows, axis=0)                             # (n_rows,H)

        vecs = jnp.stack([crit_vecs(q1_params), crit_vecs(q2_params)],
                         axis=0).astype(jnp.float32)                         # (2,n_rows,H)
        w_head = jnp.stack([w1_out, w2_out], axis=0).astype(weight_dtype)    # (2,H,1)
    else:
        w0 = jnp.concatenate([layer(q1_params, 0)[0], layer(q2_params, 0)[0]],
                             axis=1).astype(weight_dtype)                    # (in,2H)
        wh = None
        if L > 1:
            blocks = []
            for l in range(1, L):
                w1 = layer(q1_params, l)[0]
                w2 = layer(q2_params, l)[0]
                top = jnp.concatenate([w1, jnp.zeros_like(w1)], axis=1)
                bot = jnp.concatenate([jnp.zeros_like(w2), w2], axis=1)
                blocks.append(jnp.concatenate([top, bot], axis=0))
            wh = jnp.stack(blocks, axis=0).astype(weight_dtype)              # (L-1,2H,2H)

        rows = [jnp.concatenate([layer(q1_params, l)[1], layer(q2_params, l)[1]], 1)
                for l in range(L)]
        if norm:
            rows += [jnp.concatenate([layer(q1_params, l)[2], layer(q2_params, l)[2]], 1)
                     for l in range(L)]
            rows += [jnp.concatenate([layer(q1_params, l)[3], layer(q2_params, l)[3]], 1)
                     for l in range(L)]
        vecs = jnp.concatenate(rows, axis=0).astype(jnp.float32)             # (n_rows,2H)

        zcol = jnp.zeros_like(w1_out)
        w_head = jnp.concatenate(
            [jnp.concatenate([w1_out, zcol], axis=1),
             jnp.concatenate([zcol, w2_out], axis=1)], axis=0).astype(weight_dtype)  # (2H,2)

    return {"w0": w0, "wh": wh, "vecs": vecs, "w_head": w_head, "b_head": b_head}


# ----------------------------------------------------------------------------
# Fused kernel: both critics in one pass.
# ----------------------------------------------------------------------------
def make_double_q_kernel(num_hidden, norm, H, split):
    HH = 2 * H
    has_wh = num_hidden > 1
    inv_h = 1.0 / float(H)
    aligned = (H % 128 == 0)   # per-critic halves are 128-lane aligned

    def kernel(*refs):
        if has_wh:
            x_ref, w0_ref, wh_ref, vecs_ref, w_head_ref, b_head_ref, o_ref = refs
        else:
            x_ref, w0_ref, vecs_ref, w_head_ref, b_head_ref, o_ref = refs
            wh_ref = None

        x = x_ref[...]
        bt = x.shape[0]

        def mm(lhs, w):
            # MXU matmul; cast activations to the (possibly bf16) weight dtype only
            # at the dot -- all LayerNorm / activation math stays f32.
            lhs = lhs if lhs.dtype == w.dtype else lhs.astype(w.dtype)
            return jnp.dot(lhs, w, preferred_element_type=jnp.float32)

        if split:
            # ---- wide critics: no zero blocks, plain per-critic LayerNorm ----
            def run_critic(c):
                vc = vecs_ref[c]                              # (n_rows, H) f32
                h = mm(x, w0_ref[c]) + vc[0:1, :]
                if norm:
                    h = _layernorm(h, vc[num_hidden:num_hidden + 1, :],
                                   vc[2 * num_hidden:2 * num_hidden + 1, :])
                h = jnp.maximum(h, 0.0)
                for l in range(1, num_hidden):
                    h = mm(h, wh_ref[l - 1, c]) + vc[l:l + 1, :]
                    if norm:
                        h = _layernorm(h, vc[num_hidden + l:num_hidden + l + 1, :],
                                       vc[2 * num_hidden + l:2 * num_hidden + l + 1, :])
                    # TODO(synk): get_activation(...) unspecified; ReLU assumed.
                    h = jnp.maximum(h, 0.0)
                return mm(h, w_head_ref[c])                   # (bt, 1)

            q = jnp.concatenate([run_critic(0), run_critic(1)], axis=-1)
            q = q + b_head_ref[...]
        else:
            # ---- narrow critics: fused [., 2H] activations, masked per-critic LN ----
            vecs = vecs_ref[...]                              # (n_rows, 2H) f32
            if not aligned:
                second = jax.lax.broadcasted_iota(jnp.int32, (bt, HH), 1) >= H

            def half_sums(v):
                # one select instead of two: s1 = total - s2
                s_tot = jnp.sum(v, axis=-1, keepdims=True)
                s2 = jnp.sum(jnp.where(second, v, 0.0), axis=-1, keepdims=True)
                return s_tot - s2, s2

            def fused_layernorm(v, gamma, beta):
                if aligned:   # mask-free path: 128-aligned lane slices
                    return jnp.concatenate(
                        [_layernorm(v[:, :H], gamma[:, :H], beta[:, :H]),
                         _layernorm(v[:, H:], gamma[:, H:], beta[:, H:])], axis=-1)
                s1, s2 = half_sums(v)
                mu = jnp.where(second, s2, s1) * inv_h
                d = v - mu
                v1, v2 = half_sums(d * d)
                var = jnp.where(second, v2, v1) * inv_h       # biased, like torch
                return d * jax.lax.rsqrt(var + _LN_EPS) * gamma + beta

            h = x
            for l in range(num_hidden):
                w = w0_ref[...] if l == 0 else wh_ref[l - 1]
                h = mm(h, w) + vecs[l:l + 1, :]
                if norm:
                    h = fused_layernorm(
                        h,
                        vecs[num_hidden + l:num_hidden + l + 1, :],
                        vecs[2 * num_hidden + l:2 * num_hidden + l + 1, :])
                # TODO(synk): get_activation(...) unspecified; ReLU assumed.
                h = jnp.maximum(h, 0.0)

            # Output heads on the (idle) MXU: (bt, 2H) @ (2H, 2) + (1, 2).
            q = mm(h, w_head_ref[...]) + b_head_ref[...]

        o_ref[...] = q.astype(o_ref.dtype)                    # single store

    return kernel


# ----------------------------------------------------------------------------
# Wrapper.
# ----------------------------------------------------------------------------
@functools.partial(jax.jit, static_argnames=("num_hidden", "norm", "hidden_width"))
def double_q_forward(x, packed, *, num_hidden, norm, hidden_width):
    """Returns (q1, q2), each (B, 1), computed by a single fused Pallas kernel."""
    B, in_dim = x.shape
    H = hidden_width
    HH = 2 * H
    split = 2 * H > _FUSED_MAX_2H
    has_wh = num_hidden > 1

    # Batch tiling with minimal padding: ceil(B/1024) equal tiles rounded to 8 rows.
    # (B=1040 -> 2 balanced tiles of 520 rows: zero padded rows, and 2 "parallel"
    # tiles for v7x's two TensorCores; small B -> a single tile.)
    num_tiles = max(1, -(-B // _MAX_BLOCK_B))
    block_b = _round_up(-(-B // num_tiles), 8)
    Bp = block_b * num_tiles
    if Bp != B:
        # Padded rows flow through LayerNorm with var=0 -> 0*rsqrt(eps), finite;
        # they are sliced off below.
        x = jnp.pad(x, ((0, Bp - B), (0, 0)))

    kernel = make_double_q_kernel(num_hidden, norm, H, split)

    def resident(arr):
        # Weights are identical for every batch tile -> constant index map and a
        # single VMEM buffer (no pointless double-buffering).
        rank = arr.ndim
        return pl.BlockSpec(arr.shape, lambda i: (0,) * rank,
                            pipeline_mode=pl.Buffered(1))

    args = [x, packed["w0"]]
    in_specs = [pl.BlockSpec((block_b, in_dim), lambda i: (i, 0)),
                resident(packed["w0"])]
    if has_wh:
        args.append(packed["wh"])
        in_specs.append(resident(packed["wh"]))
    args += [packed["vecs"], packed["w_head"], packed["b_head"]]
    in_specs += [resident(packed["vecs"]), resident(packed["w_head"]),
                 resident(packed["b_head"])]

    out_specs = pl.BlockSpec((block_b, 2), lambda i: (i, 0))

    # Advisory cost estimate.
    mm_flops_per_row = in_dim * HH + HH * 2
    mm_flops_per_row += (num_hidden - 1) * ((2 * H * H) if split else (HH * HH))
    flops = 2 * Bp * mm_flops_per_row
    param_bytes = sum(int(a.size) * a.dtype.itemsize for a in args[1:])
    bytes_accessed = int(x.size) * x.dtype.itemsize + param_bytes + Bp * 2 * 4
    transcendentals = Bp * num_hidden * 2 if norm else 0

    # VMEM budget: single-buffered resident weights + double-buffered x/out tiles
    # + a few live activation temporaries (f32, width 2H).
    footprint = (param_bytes
                 + 2 * block_b * in_dim * 4
                 + 2 * block_b * 2 * 4
                 + 8 * block_b * HH * 4)
    vmem_limit = int(min(96 * 2 ** 20, max(32 * 2 ** 20, int(footprint * 1.5))))

    out = pl.pallas_call(
        kernel,
        out_shape=jax.ShapeDtypeStruct((Bp, 2), jnp.float32),
        grid=(num_tiles,),
        in_specs=in_specs,
        out_specs=out_specs,
        compiler_params=pltpu.CompilerParams(
            dimension_semantics=("parallel",),
            vmem_limit_bytes=vmem_limit),
        cost_estimate=pl.CostEstimate(flops=flops,
                                      transcendentals=transcendentals,
                                      bytes_accessed=bytes_accessed),
    )(*args)

    return out[:B, 0:1], out[:B, 1:2]


# ----------------------------------------------------------------------------
# Demo / correctness checks.
# ----------------------------------------------------------------------------
if __name__ == "__main__":
    def check(obs_dim, action_dim, hidden_dims, norm, batch,
              weight_dtype=jnp.float32, atol=1e-4, rtol=1e-4, tag=""):
        in_dim = obs_dim + action_dim
        L = len(hidden_dims)
        key = jax.random.PRNGKey(0)
        kx, k1, k2 = jax.random.split(key, 3)
        q1_params = init_critic_params(k1, in_dim, hidden_dims, norm)
        q2_params = init_critic_params(k2, in_dim, hidden_dims, norm)
        packed = pack_double_q_params(q1_params, q2_params, hidden_dims, norm,
                                      weight_dtype=weight_dtype)
        x = jax.random.normal(kx, (batch, in_dim), jnp.float32)
        q1, q2 = double_q_forward(x, packed, num_hidden=L, norm=norm,
                                  hidden_width=hidden_dims[0])
        jax.block_until_ready((q1, q2))
        q1_ref = critic_reference(x, q1_params, L, norm)
        q2_ref = critic_reference(x, q2_params, L, norm)
        assert q1.shape == (batch, 1) and q2.shape == (batch, 1), tag
        assert bool(jnp.all(jnp.isfinite(q1))) and bool(jnp.all(jnp.isfinite(q2))), tag
        assert jnp.allclose(q1, q1_ref, atol=atol, rtol=rtol), tag
        assert jnp.allclose(q2, q2_ref, atol=atol, rtol=rtol), tag

    # Small demo config: fused block-diagonal path, masked per-critic LayerNorm.
    check(16, 8, (32, 32), True, 8, tag="small")
    # Training-sized batch: 2 balanced batch tiles of 520 rows, zero padding.
    check(16, 8, (32, 32), True, 1040, tag="big-batch")
    # norm=False / single hidden layer (no wh input) edge case.
    check(16, 8, (48,), False, 16, tag="no-norm")
    # Wide critic -> split per-critic matmuls (no zero blocks), plain per-critic LN.
    check(24, 8, (256, 256), True, 96, tag="split")
    # bf16 matmul operands (MXU-native); LayerNorm / activations stay f32.
    check(24, 8, (256, 256), True, 96, weight_dtype=jnp.bfloat16,
          atol=1e-1, rtol=1e-1, tag="split-bf16")

    print("KERNEL_OK")
</pallas_src>

<mosaic_0001>
module attributes {stable_mosaic.version = 11 : i64} {
  func.func @kernel(%arg0: i32, %arg1: memref<8x24xf32, #tpu.memory_space<vmem>>, %arg2: memref<24x64xf32, #tpu.memory_space<vmem>>, %arg3: memref<1x64x64xf32, #tpu.memory_space<vmem>>, %arg4: memref<6x64xf32, #tpu.memory_space<vmem>>, %arg5: memref<64x2xf32, #tpu.memory_space<vmem>>, %arg6: memref<1x2xf32, #tpu.memory_space<vmem>>, %arg7: memref<8x2xf32, #tpu.memory_space<vmem>>) attributes {dimension_semantics = [#tpu.dimension_semantics<parallel>], iteration_bounds = array<i64: 1>, scalar_prefetch = 0 : i64, scratch_operands = 0 : i64, tpu.core_type = #tpu.core_type<tc>, window_params = [{transform_indices = @transform_0, window_bounds = array<i64: 8, 24>}, {pipeline_mode = #tpu.pipeline_mode<synchronous>, transform_indices = @transform_1, window_bounds = array<i64: 24, 64>}, {pipeline_mode = #tpu.pipeline_mode<synchronous>, transform_indices = @transform_2, window_bounds = array<i64: 1, 64, 64>}, {pipeline_mode = #tpu.pipeline_mode<synchronous>, transform_indices = @transform_3, window_bounds = array<i64: 6, 64>}, {pipeline_mode = #tpu.pipeline_mode<synchronous>, transform_indices = @transform_4, window_bounds = array<i64: 64, 2>}, {pipeline_mode = #tpu.pipeline_mode<synchronous>, transform_indices = @transform_5, window_bounds = array<i64: 1, 2>}, {transform_indices = @transform_6, window_bounds = array<i64: 8, 2>}]} {
    %c0 = arith.constant 0 : index
    %c0_0 = arith.constant 0 : index
    %0 = vector.load %arg1[%c0, %c0_0] : memref<8x24xf32, #tpu.memory_space<vmem>>, vector<8x24xf32>
    %c0_1 = arith.constant 0 : index
    %c0_2 = arith.constant 0 : index
    %1 = vector.load %arg4[%c0_1, %c0_2] : memref<6x64xf32, #tpu.memory_space<vmem>>, vector<6x64xf32>
    %2 = tpu.iota {dimensions = array<i32: 1>} : vector<8x64xi32>
    %c32_i32 = arith.constant 32 : i32
    %3 = vector.broadcast %c32_i32 : i32 to vector<8x64xi32>
    %4 = arith.cmpi sge, %2, %3 : vector<8x64xi32>
    %c0_3 = arith.constant 0 : index
    %c0_4 = arith.constant 0 : index
    %5 = vector.load %arg2[%c0_3, %c0_4] : memref<24x64xf32, #tpu.memory_space<vmem>>, vector<24x64xf32>
    %cst = arith.constant dense<0.000000e+00> : vector<8x64xf32>
    %6 = tpu.matmul %0, %5, %cst {dimension_numbers = #tpu.dot_dimension_numbers<[1], [0], [0], [1], [0, 0, 1, 1], [], []>} : vector<8x24xf32>, vector<24x64xf32>, vector<8x64xf32> -> vector<8x64xf32>
    %7 = vector.extract_strided_slice %1 {offsets = [0, 0], sizes = [1, 64], strides = [1, 1]} : vector<6x64xf32> to vector<1x64xf32>
    %8 = vector.broadcast %7 : vector<1x64xf32> to vector<8x64xf32>
    %9 = arith.addf %6, %8 : vector<8x64xf32>
    %10 = vector.extract_strided_slice %1 {offsets = [2, 0], sizes = [1, 64], strides = [1, 1]} : vector<6x64xf32> to vector<1x64xf32>
    %11 = vector.extract_strided_slice %1 {offsets = [4, 0], sizes = [1, 64], strides = [1, 1]} : vector<6x64xf32> to vector<1x64xf32>
    %cst_5 = arith.constant dense<0.000000e+00> : vector<8xf32>
    %12 = vector.multi_reduction <add>, %9, %cst_5 [1] : vector<8x64xf32> to vector<8xf32>
    %13 = vector.shape_cast %12 : vector<8xf32> to vector<8x1xf32>
    %cst_6 = arith.constant 0.000000e+00 : f32
    %14 = vector.broadcast %cst_6 : f32 to vector<8x64xf32>
    %15 = arith.select %4, %9, %14 : vector<8x64xi1>, vector<8x64xf32>
    %cst_7 = arith.constant dense<0.000000e+00> : vector<8xf32>
    %16 = vector.multi_reduction <add>, %15, %cst_7 [1] : vector<8x64xf32> to vector<8xf32>
    %17 = vector.shape_cast %16 : vector<8xf32> to vector<8x1xf32>
    %18 = arith.subf %13, %17 : vector<8x1xf32>
    %19 = vector.shape_cast %17 : vector<8x1xf32> to vector<8x1xf32>
    %20 = vector.broadcast %19 : vector<8x1xf32> to vector<8x64xf32>
    %21 = vector.shape_cast %18 : vector<8x1xf32> to vector<8x1xf32>
    %22 = vector.broadcast %21 : vector<8x1xf32> to vector<8x64xf32>
    %23 = arith.select %4, %20, %22 : vector<8x64xi1>, vector<8x64xf32>
    %cst_8 = arith.constant 3.125000e-02 : f32
    %24 = vector.broadcast %cst_8 : f32 to vector<8x64xf32>
    %25 = arith.mulf %23, %24 : vector<8x64xf32>
    %26 = arith.subf %9, %25 : vector<8x64xf32>
    %27 = arith.mulf %26, %26 : vector<8x64xf32>
    %cst_9 = arith.constant dense<0.000000e+00> : vector<8xf32>
    %28 = vector.multi_reduction <add>, %27, %cst_9 [1] : vector<8x64xf32> to vector<8xf32>
    %29 = vector.shape_cast %28 : vector<8xf32> to vector<8x1xf32>
    %cst_10 = arith.constant 0.000000e+00 : f32
    %30 = vector.broadcast %cst_10 : f32 to vector<8x64xf32>
    %31 = arith.select %4, %27, %30 : vector<8x64xi1>, vector<8x64xf32>
    %cst_11 = arith.constant dense<0.000000e+00> : vector<8xf32>
    %32 = vector.multi_reduction <add>, %31, %cst_11 [1] : vector<8x64xf32> to vector<8xf32>
    %33 = vector.shape_cast %32 : vector<8xf32> to vector<8x1xf32>
    %34 = arith.subf %29, %33 : vector<8x1xf32>
    %35 = vector.shape_cast %33 : vector<8x1xf32> to vector<8x1xf32>
    %36 = vector.broadcast %35 : vector<8x1xf32> to vector<8x64xf32>
    %37 = vector.shape_cast %34 : vector<8x1xf32> to vector<8x1xf32>
    %38 = vector.broadcast %37 : vector<8x1xf32> to vector<8x64xf32>
    %39 = arith.select %4, %36, %38 : vector<8x64xi1>, vector<8x64xf32>
    %cst_12 = arith.constant 3.125000e-02 : f32
    %40 = vector.broadcast %cst_12 : f32 to vector<8x64xf32>
    %41 = arith.mulf %39, %40 : vector<8x64xf32>
    %cst_13 = arith.constant 9.99999974E-6 : f32
    %42 = vector.broadcast %cst_13 : f32 to vector<8x64xf32>
    %43 = arith.addf %41, %42 : vector<8x64xf32>
    %44 = math.rsqrt %43 : vector<8x64xf32>
    %45 = arith.mulf %26, %44 : vector<8x64xf32>
    %46 = vector.broadcast %10 : vector<1x64xf32> to vector<8x64xf32>
    %47 = arith.mulf %45, %46 : vector<8x64xf32>
    %48 = vector.broadcast %11 : vector<1x64xf32> to vector<8x64xf32>
    %49 = arith.addf %47, %48 : vector<8x64xf32>
    %cst_14 = arith.constant 0.000000e+00 : f32
    %50 = vector.broadcast %cst_14 : f32 to vector<8x64xf32>
    %51 = arith.maximumf %49, %50 : vector<8x64xf32>
    %c0_15 = arith.constant 0 : index
    %c0_16 = arith.constant 0 : index
    %c0_17 = arith.constant 0 : index
    %52 = vector.load %arg3[%c0_15, %c0_16, %c0_17] : memref<1x64x64xf32, #tpu.memory_space<vmem>>, vector<1x64x64xf32>
    %53 = vector.shape_cast %52 : vector<1x64x64xf32> to vector<64x64xf32>
    %cst_18 = arith.constant dense<0.000000e+00> : vector<8x64xf32>
    %54 = tpu.matmul %51, %53, %cst_18 {dimension_numbers = #tpu.dot_dimension_numbers<[1], [0], [0], [1], [0, 0, 1, 1], [], []>} : vector<8x64xf32>, vector<64x64xf32>, vector<8x64xf32> -> vector<8x64xf32>
    %55 = vector.extract_strided_slice %1 {offsets = [1, 0], sizes = [1, 64], strides = [1, 1]} : vector<6x64xf32> to vector<1x64xf32>
    %56 = vector.broadcast %55 : vector<1x64xf32> to vector<8x64xf32>
    %57 = arith.addf %54, %56 : vector<8x64xf32>
    %58 = vector.extract_strided_slice %1 {offsets = [3, 0], sizes = [1, 64], strides = [1, 1]} : vector<6x64xf32> to vector<1x64xf32>
    %59 = vector.extract_strided_slice %1 {offsets = [5, 0], sizes = [1, 64], strides = [1, 1]} : vector<6x64xf32> to vector<1x64xf32>
    %cst_19 = arith.constant dense<0.000000e+00> : vector<8xf32>
    %60 = vector.multi_reduction <add>, %57, %cst_19 [1] : vector<8x64xf32> to vector<8xf32>
    %61 = vector.shape_cast %60 : vector<8xf32> to vector<8x1xf32>
    %cst_20 = arith.constant 0.000000e+00 : f32
    %62 = vector.broadcast %cst_20 : f32 to vector<8x64xf32>
    %63 = arith.select %4, %57, %62 : vector<8x64xi1>, vector<8x64xf32>
    %cst_21 = arith.constant dense<0.000000e+00> : vector<8xf32>
    %64 = vector.multi_reduction <add>, %63, %cst_21 [1] : vector<8x64xf32> to vector<8xf32>
    %65 = vector.shape_cast %64 : vector<8xf32> to vector<8x1xf32>
    %66 = arith.subf %61, %65 : vector<8x1xf32>
    %67 = vector.shape_cast %65 : vector<8x1xf32> to vector<8x1xf32>
    %68 = vector.broadcast %67 : vector<8x1xf32> to vector<8x64xf32>
    %69 = vector.shape_cast %66 : vector<8x1xf32> to vector<8x1xf32>
    %70 = vector.broadcast %69 : vector<8x1xf32> to vector<8x64xf32>
    %71 = arith.select %4, %68, %70 : vector<8x64xi1>, vector<8x64xf32>
    %cst_22 = arith.constant 3.125000e-02 : f32
    %72 = vector.broadcast %cst_22 : f32 to vector<8x64xf32>
    %73 = arith.mulf %71, %72 : vector<8x64xf32>
    %74 = arith.subf %57, %73 : vector<8x64xf32>
    %75 = arith.mulf %74, %74 : vector<8x64xf32>
    %cst_23 = arith.constant dense<0.000000e+00> : vector<8xf32>
    %76 = vector.multi_reduction <add>, %75, %cst_23 [1] : vector<8x64xf32> to vector<8xf32>
    %77 = vector.shape_cast %76 : vector<8xf32> to vector<8x1xf32>
    %cst_24 = arith.constant 0.000000e+00 : f32
    %78 = vector.broadcast %cst_24 : f32 to vector<8x64xf32>
    %79 = arith.select %4, %75, %78 : vector<8x64xi1>, vector<8x64xf32>
    %cst_25 = arith.constant dense<0.000000e+00> : vector<8xf32>
    %80 = vector.multi_reduction <add>, %79, %cst_25 [1] : vector<8x64xf32> to vector<8xf32>
    %81 = vector.shape_cast %80 : vector<8xf32> to vector<8x1xf32>
    %82 = arith.subf %77, %81 : vector<8x1xf32>
    %83 = vector.shape_cast %81 : vector<8x1xf32> to vector<8x1xf32>
    %84 = vector.broadcast %83 : vector<8x1xf32> to vector<8x64xf32>
    %85 = vector.shape_cast %82 : vector<8x1xf32> to vector<8x1xf32>
    %86 = vector.broadcast %85 : vector<8x1xf32> to vector<8x64xf32>
    %87 = arith.select %4, %84, %86 : vector<8x64xi1>, vector<8x64xf32>
    %cst_26 = arith.constant 3.125000e-02 : f32
    %88 = vector.broadcast %cst_26 : f32 to vector<8x64xf32>
    %89 = arith.mulf %87, %88 : vector<8x64xf32>
    %cst_27 = arith.constant 9.99999974E-6 : f32
    %90 = vector.broadcast %cst_27 : f32 to vector<8x64xf32>
    %91 = arith.addf %89, %90 : vector<8x64xf32>
    %92 = math.rsqrt %91 : vector<8x64xf32>
    %93 = arith.mulf %74, %92 : vector<8x64xf32>
    %94 = vector.broadcast %58 : vector<1x64xf32> to vector<8x64xf32>
    %95 = arith.mulf %93, %94 : vector<8x64xf32>
    %96 = vector.broadcast %59 : vector<1x64xf32> to vector<8x64xf32>
    %97 = arith.addf %95, %96 : vector<8x64xf32>
    %cst_28 = arith.constant 0.000000e+00 : f32
    %98 = vector.broadcast %cst_28 : f32 to vector<8x64xf32>
    %99 = arith.maximumf %97, %98 : vector<8x64xf32>
    %c0_29 = arith.constant 0 : index
    %c0_30 = arith.constant 0 : index
    %100 = vector.load %arg5[%c0_29, %c0_30] : memref<64x2xf32, #tpu.memory_space<vmem>>, vector<64x2xf32>
    %cst_31 = arith.constant dense<0.000000e+00> : vector<8x2xf32>
    %101 = tpu.matmul %99, %100, %cst_31 {dimension_numbers = #tpu.dot_dimension_numbers<[1], [0], [0], [1], [0, 0, 1, 1], [], []>} : vector<8x64xf32>, vector<64x2xf32>, vector<8x2xf32> -> vector<8x2xf32>
    %c0_32 = arith.constant 0 : index
    %c0_33 = arith.constant 0 : index
    %102 = vector.load %arg6[%c0_32, %c0_33] : memref<1x2xf32, #tpu.memory_space<vmem>>, vector<1x2xf32>
    %103 = vector.broadcast %102 : vector<1x2xf32> to vector<8x2xf32>
    %104 = arith.addf %101, %103 : vector<8x2xf32>
    %c0_34 = arith.constant 0 : index
    %c0_35 = arith.constant 0 : index
    %105 = vector.load %arg7[%c0_34, %c0_35] : memref<8x2xf32, #tpu.memory_space<vmem>>, vector<8x2xf32>
    tpu.vector_store %arg7[%c0_34, %c0_35], %104 {strides = array<i32>} : memref<8x2xf32, #tpu.memory_space<vmem>>, vector<8x2xf32>,
    return
  }
  func.func @transform_0(%arg0: i32) -> (i32, i32) {
    %c0_i32 = arith.constant 0 : i32
    %c0_i32_0 = arith.constant 0 : i32
    return %arg0, %c0_i32 : i32, i32
  }
  func.func @transform_1(%arg0: i32) -> (i32, i32) {
    %c0_i32 = arith.constant 0 : i32
    %c0_i32_0 = arith.constant 0 : i32
    %c0_i32_1 = arith.constant 0 : i32
    return %c0_i32, %c0_i32_0 : i32, i32
  }
  func.func @transform_2(%arg0: i32) -> (i32, i32, i32) {
    %c0_i32 = arith.constant 0 : i32
    %c0_i32_0 = arith.constant 0 : i32
    %c0_i32_1 = arith.constant 0 : i32
    %c0_i32_2 = arith.constant 0 : i32
    return %c0_i32, %c0_i32_0, %c0_i32_1 : i32, i32, i32
  }
  func.func @transform_3(%arg0: i32) -> (i32, i32) {
    %c0_i32 = arith.constant 0 : i32
    %c0_i32_0 = arith.constant 0 : i32
    %c0_i32_1 = arith.constant 0 : i32
    return %c0_i32, %c0_i32_0 : i32, i32
  }
  func.func @transform_4(%arg0: i32) -> (i32, i32) {
    %c0_i32 = arith.constant 0 : i32
    %c0_i32_0 = arith.constant 0 : i32
    %c0_i32_1 = arith.constant 0 : i32
    return %c0_i32, %c0_i32_0 : i32, i32
  }
  func.func @transform_5(%arg0: i32) -> (i32, i32) {
    %c0_i32 = arith.constant 0 : i32
    %c0_i32_0 = arith.constant 0 : i32
    %c0_i32_1 = arith.constant 0 : i32
    return %c0_i32, %c0_i32_0 : i32, i32
  }
  func.func @transform_6(%arg0: i32) -> (i32, i32) {
    %c0_i32 = arith.constant 0 : i32
    %c0_i32_0 = arith.constant 0 : i32
    return %arg0, %c0_i32 : i32, i32
  }
}

</mosaic_0001>

<llo_original>
// kernel: double_q_forward.1
$region0: #{double_q_forward.1}
  #allocation0 [shape = 'u32[]', space=smem, size = 0x4, offset = 0x4, fixed_abs, tag = 'smem constant byte address 0x4 - core index']
  #allocation1 [shape = 'u32[144,128]{1,0:T(1,128)}', space=vmem, size = 0x12000, scoped, tag = 'internal scratch']
  %s0 = inlined_call_operand.vmem [shape: f32[8,24], index: 0, kind: input, shape index: {}]
  %s1 = inlined_call_operand.hbm [shape: f32[24,64], index: 1, kind: input, shape index: {}]
  %s2 = inlined_call_operand.vmem [shape: f32[1,64,64], index: 2, kind: input, shape index: {}]
  %s3 = inlined_call_operand.vmem [shape: f32[6,64], index: 3, kind: input, shape index: {}]
  %s4 = inlined_call_operand.vmem [shape: f32[64,2], index: 4, kind: input, shape index: {}]
  %s5 = inlined_call_operand.vmem [shape: f32[1,2], index: 5, kind: input, shape index: {}]
  %s6 = inlined_call_operand.vmem [shape: f32[8,2], index: 6, kind: output, shape index: {}]
  %s7 = sld [smem:[#allocation0]]
  $region38: #{double_q_forward.1} parent=0
    _
  %s9 = ssub.s32 1, %s7
  %s10 = scalar_select 0, %s9, %s7
  $region1: #{double_q_forward.1} parent=0
    #allocation2 [shape = 'u8[12288]{0}', space=vmem, size = 0x3000, scoped, tag = 'input window, operand 1, single buffered']
    #allocation3 [shape = 's32[1]{0}', space=sflag, size = 0x4, scoped, tag = 'scoped memory for double_q_forward.1']
    %11 = vsyncpa [#allocation3], 0
    // Predicated region
    $region2: #{double_q_forward.1} parent=1 // pred_check
      _
    $region3: #{double_q_forward.1} parent=1 // pred_check_branch
      %13 = sbr.rel (0) target = $region5
    $region4: #{double_q_forward.1} parent=1 // pred_region
      _
    $region5: #{double_q_forward.1} parent=1 // pred_fallthru
      _
    // Predicated region
    $region6: #{double_q_forward.1} parent=1 // pred_check
      _
    $region7: #{double_q_forward.1} parent=1 // pred_check_branch
      %15 = sbr.rel (0) target = $region9
    $region8: #{double_q_forward.1} parent=1 // pred_region
      %s17 = ssub.s32 384, 384
      %18 = vsyncadd [#allocation3], %s17
      %s19 = sshll.u32 [#allocation2], 4
      %s20 = int_to_ptr.vmem [resolvable:$true] %s19
      %25 = dma.hbm_to_vmem [thread:$0]  %s1, 384, %s20, [#allocation3], 128, 128, 8
    $region9: #{double_q_forward.1} parent=1 // pred_fallthru
      _
    // Predicated region
    $region10: #{double_q_forward.1} parent=1 // pred_check
      _
    $region11: #{double_q_forward.1} parent=1 // pred_check_branch
      %27 = sbr.rel (0) target = $region13
    $region12: #{double_q_forward.1} parent=1 // pred_region
      _
    $region13: #{double_q_forward.1} parent=1 // pred_fallthru
      _
    // Predicated region
    $region14: #{double_q_forward.1} parent=1 // pred_check
      _
    $region15: #{double_q_forward.1} parent=1 // pred_check_branch
      %29 = sbr.rel (0) target = $region17
    $region16: #{double_q_forward.1} parent=1 // pred_region
      _
    $region17: #{double_q_forward.1} parent=1 // pred_fallthru
      _
    // Predicated region
    $region18: #{double_q_forward.1} parent=1 // pred_check
      _
    $region19: #{double_q_forward.1} parent=1 // pred_check_branch
      %31 = sbr.rel (0) target = $region21
    $region20: #{double_q_forward.1} parent=1 // pred_region
      _
    $region21: #{double_q_forward.1} parent=1 // pred_fallthru
      _
    // Predicated region
    $region22: #{double_q_forward.1} parent=1 // pred_check
      _
    $region23: #{double_q_forward.1} parent=1 // pred_check_branch
      %33 = sbr.rel (0) target = $region25
    $region24: #{double_q_forward.1} parent=1 // pred_region
      _
    $region25: #{double_q_forward.1} parent=1 // pred_fallthru
      _
    // Predicated region
    $region26: #{double_q_forward.1} parent=1 // pred_check
      _
    $region27: #{double_q_forward.1} parent=1 // pred_check_branch
      %35 = sbr.rel (0) target = $region29
    $region28: #{double_q_forward.1} parent=1 // pred_region
      %36 = dma.done [#allocation3], 384
    $region29: #{double_q_forward.1} parent=1 // pred_fallthru
      _
    %v37 = vld [vmem:[%s0] sm:$0xff]
    %v38 = vld [vmem:[%s3] sm:$0x3f]
    %v39 = vlaneseq
    %v40 = vand.u32 %v39, 127
    %vm41 = vcmp.ge.s32.totalorder %v40, 32
    %v42 = vld [vmem:[#allocation2] sm:$0xff]
    %v43 = vld [vmem:[#allocation2 + $0x8] sm:$0xff]
    %v44 = vld [vmem:[#allocation2 + $0x10] sm:$0xff]
    %v45 = vlaneseq
    %v46 = vshrl.u32 %v45, 7
    %v47 = vsub.s32 0, %v46
    %v48 = vrot.slane %v38, %v47
    %vm49 = vcmask 195584
    %v51 = vsel %vm49, %v37, 0
    %53 = vmatprep.subr.mxu0 0.0
    %54 = vmatpush1.msra.mxu0 %v42
    %55 = vmatprep.subr.mxu0 0.0
    %56 = vmatpush1.msra.mxu0 %v43
    %57 = vmatprep.subr.mxu0 0.0
    %58 = vmatpush1.msra.mxu0 %v44
    %59 = vmatprep.subr.mxu0 0.0
    %60 = vmatpush1.msra.mxu0 0.0
    %61 = vmatprep.subr.mxu0 0.0
    %62 = vmatpush1.msra.mxu0 0.0
    %63 = vmatprep.subr.mxu0 0.0
    %64 = vmatpush1.msra.mxu0 0.0
    %65 = vmatprep.subr.mxu0 0.0
    %66 = vmatpush1.msra.mxu0 0.0
    %67 = vmatprep.subr.mxu0 0.0
    %68 = vmatpush1.msra.mxu0 0.0
    %69 = vmatprep.subr.mxu0 0.0
    %70 = vmatpush1.msra.mxu0 0.0
    %71 = vmatprep.subr.mxu0 0.0
    %72 = vmatpush1.msra.mxu0 0.0
    %73 = vmatprep.subr.mxu0 0.0
    %74 = vmatpush1.msra.mxu0 0.0
    %75 = vmatprep.subr.mxu0 0.0
    %76 = vmatpush1.msra.mxu0 0.0
    %77 = vmatprep.subr.mxu0 0.0
    %78 = vmatpush1.msra.mxu0 0.0
    %79 = vmatprep.subr.mxu0 0.0
    %80 = vmatpush1.msra.mxu0 0.0
    %81 = vmatprep.subr.mxu0 0.0
    %82 = vmatpush1.msra.mxu0 0.0
    %83 = vmatprep.subr.mxu0 0.0
    %84 = vmatpush1.msra.mxu0 0.0
    %85 = vmatprep.subr.mxu0 0.0
    %86 = vmatpush1.msra.mxu0 0.0
    %87 = vmatprep.subr.mxu0 0.0
    %88 = vmatpush1.msra.mxu0 0.0
    %89 = vmatprep.subr.mxu0 0.0
    %90 = vmatpush1.msra.mxu0 0.0
    %91 = vmatprep.subr.mxu0 0.0
    %92 = vmatpush1.msra.mxu0 0.0
    %93 = vmatprep.subr.mxu0 0.0
    %94 = vmatpush1.msra.mxu0 0.0
    %95 = vmatprep.subr.mxu0 0.0
    %96 = vmatpush1.msra.mxu0 0.0
    %97 = vmatprep.subr.mxu0 0.0
    %98 = vmatpush1.msra.mxu0 0.0
    %99 = vmatprep.subr.mxu0 0.0
    %100 = vmatpush1.msra.mxu0 0.0
    %101 = vmatprep.subr.mxu0 0.0
    %102 = vmatpush1.msra.mxu0 0.0
    %103 = vmatprep.subr.mxu0 0.0
    %104 = vmatpush1.msra.mxu0 0.0
    %105 = vmatprep.subr.mxu0 0.0
    %106 = vmatpush1.msra.mxu0 0.0
    %107 = vmatprep.subr.mxu0 0.0
    %108 = vmatpush1.msra.mxu0 0.0
    %109 = vmatprep.subr.mxu0 0.0
    %110 = vmatpush1.msra.mxu0 0.0
    %111 = vmatprep.subr.mxu0 0.0
    %112 = vmatpush1.msra.mxu0 0.0
    %113 = vmatprep.subr.mxu0 0.0
    %114 = vmatpush1.msra.mxu0 0.0
    %115 = vmatprep.subr.mxu0 0.0
    %116 = vmatpush1.msra.mxu0 0.0
    %117 = vmatprep.mubr.f32.mxu0 0.0
    %118 = vmatmul.mubr.f32.gmra.mrb[0].mxu0 %v51
    %v119 = vpop.f32.mrb[0].mxu0
    %v120 = vadd.f32 %v48, %v119
    %v121 = vpop.f32.mrb[0].mxu0
    %122 = vdwg.mxu0
    %vm123 = vcmask 523264
    %v124 = vsel %vm123, %v120, 0.0
    %125 = vadd.xlane.f32.xlu0 %v124
    %v126 = vpop.xlane.xlu0 %125
    %v127 = vsel %vm41, %v120, 0.0
    %v128 = vsel %vm123, %v127, 0.0
    %129 = vadd.xlane.f32.xlu0 %v128
    %v130 = vpop.xlane.xlu0 %129
    %v131 = vsub.f32 %v126, %v130
    %v132 = vsel %vm41, %v130, %v131
    %v133 = vmul.f32 %v132, 0.03125
    %v134 = vsub.f32 %v120, %v133
    %v135 = vmul.f32 %v134, %v134
    %v136 = vsel %vm123, %v135, 0.0
    %137 = vadd.xlane.f32.xlu0 %v136
    %v138 = vpop.xlane.xlu0 %137
    %v139 = vsel %vm41, %v135, 0.0
    %v140 = vsel %vm123, %v139, 0.0
    %141 = vadd.xlane.f32.xlu0 %v140
    %v142 = vpop.xlane.xlu0 %141
    %v143 = vsub.f32 %v138, %v142
    %v144 = vsel %vm41, %v142, %v143
    %v145 = vmul.f32 %v144, 0.03125
    %v146 = vadd.f32 %v145, 1e-05
    %v147 = vrsqrt.pop %v146
    %v148 = vmul.f32 %v134, %v147
    %v149 = vlaneseq
    %v150 = vshrl.u32 %v149, 7
    %v151 = vsub.s32 2, %v150
    %v152 = vrot.slane %v38, %v151
    %v153 = vmul.f32 %v148, %v152
    %v154 = vlaneseq
    %v155 = vshrl.u32 %v154, 7
    %v156 = vsub.s32 4, %v155
    %v157 = vrot.slane %v38, %v156
    %v158 = vadd.f32 %v153, %v157
    %v159 = vmax.f32 %v158, 0.0
    %v160 = vld [vmem:[%s2] sm:$0xff]
    %v161 = vld [vmem:[%s2 + $0x8] sm:$0xff]
    %v162 = vld [vmem:[%s2 + $0x10] sm:$0xff]
    %v163 = vld [vmem:[%s2 + $0x18] sm:$0xff]
    %v164 = vld [vmem:[%s2 + $0x20] sm:$0xff]
    %v165 = vld [vmem:[%s2 + $0x28] sm:$0xff]
    %v166 = vld [vmem:[%s2 + $0x30] sm:$0xff]
    %v167 = vld [vmem:[%s2 + $0x38] sm:$0xff]
    %v168 = vlaneseq
    %v169 = vshrl.u32 %v168, 7
    %v170 = vsub.s32 1, %v169
    %v171 = vrot.slane %v38, %v170
    %v173 = vsel %vm123, %v159, 0
    %175 = vmatprep.subr.mxu0 0.0
    %176 = vmatpush1.msra.mxu0 %v160
    %177 = vmatprep.subr.mxu0 0.0
    %178 = vmatpush1.msra.mxu0 %v161
    %179 = vmatprep.subr.mxu0 0.0
    %180 = vmatpush1.msra.mxu0 %v162
    %181 = vmatprep.subr.mxu0 0.0
    %182 = vmatpush1.msra.mxu0 %v163
    %183 = vmatprep.subr.mxu0 0.0
    %184 = vmatpush1.msra.mxu0 %v164
    %185 = vmatprep.subr.mxu0 0.0
    %186 = vmatpush1.msra.mxu0 %v165
    %187 = vmatprep.subr.mxu0 0.0
    %188 = vmatpush1.msra.mxu0 %v166
    %189 = vmatprep.subr.mxu0 0.0
    %190 = vmatpush1.msra.mxu0 %v167
    %191 = vmatprep.subr.mxu0 0.0
    %192 = vmatpush1.msra.mxu0 0.0
    %193 = vmatprep.subr.mxu0 0.0
    %194 = vmatpush1.msra.mxu0 0.0
    %195 = vmatprep.subr.mxu0 0.0
    %196 = vmatpush1.msra.mxu0 0.0
    %197 = vmatprep.subr.mxu0 0.0
    %198 = vmatpush1.msra.mxu0 0.0
    %199 = vmatprep.subr.mxu0 0.0
    %200 = vmatpush1.msra.mxu0 0.0
    %201 = vmatprep.subr.mxu0 0.0
    %202 = vmatpush1.msra.mxu0 0.0
    %203 = vmatprep.subr.mxu0 0.0
    %204 = vmatpush1.msra.mxu0 0.0
    %205 = vmatprep.subr.mxu0 0.0
    %206 = vmatpush1.msra.mxu0 0.0
    %207 = vmatprep.subr.mxu0 0.0
    %208 = vmatpush1.msra.mxu0 0.0
    %209 = vmatprep.subr.mxu0 0.0
    %210 = vmatpush1.msra.mxu0 0.0
    %211 = vmatprep.subr.mxu0 0.0
    %212 = vmatpush1.msra.mxu0 0.0
    %213 = vmatprep.subr.mxu0 0.0
    %214 = vmatpush1.msra.mxu0 0.0
    %215 = vmatprep.subr.mxu0 0.0
    %216 = vmatpush1.msra.mxu0 0.0
    %217 = vmatprep.subr.mxu0 0.0
    %218 = vmatpush1.msra.mxu0 0.0
    %219 = vmatprep.subr.mxu0 0.0
    %220 = vmatpush1.msra.mxu0 0.0
    %221 = vmatprep.subr.mxu0 0.0
    %222 = vmatpush1.msra.mxu0 0.0
    %223 = vmatprep.subr.mxu0 0.0
    %224 = vmatpush1.msra.mxu0 0.0
    %225 = vmatprep.subr.mxu0 0.0
    %226 = vmatpush1.msra.mxu0 0.0
    %227 = vmatprep.subr.mxu0 0.0
    %228 = vmatpush1.msra.mxu0 0.0
    %229 = vmatprep.subr.mxu0 0.0
    %230 = vmatpush1.msra.mxu0 0.0
    %231 = vmatprep.subr.mxu0 0.0
    %232 = vmatpush1.msra.mxu0 0.0
    %233 = vmatprep.subr.mxu0 0.0
    %234 = vmatpush1.msra.mxu0 0.0
    %235 = vmatprep.subr.mxu0 0.0
    %236 = vmatpush1.msra.mxu0 0.0
    %237 = vmatprep.subr.mxu0 0.0
    %238 = vmatpush1.msra.mxu0 0.0
    %239 = vmatprep.mubr.f32.mxu0 0.0
    %240 = vmatmul.mubr.f32.gmra.mrb[0].mxu0 %v173
    %v241 = vpop.f32.mrb[0].mxu0
    %v242 = vadd.f32 %v171, %v241
    %v243 = vpop.f32.mrb[0].mxu0
    %244 = vdwg.mxu0
    %v245 = vsel %vm123, %v242, 0.0
    %246 = vadd.xlane.f32.xlu0 %v245
    %v247 = vpop.xlane.xlu0 %246
    %v248 = vsel %vm41, %v242, 0.0
    %v249 = vsel %vm123, %v248, 0.0
    %250 = vadd.xlane.f32.xlu0 %v249
    %v251 = vpop.xlane.xlu0 %250
    %v252 = vsub.f32 %v247, %v251
    %v253 = vsel %vm41, %v251, %v252
    %v254 = vmul.f32 %v253, 0.03125
    %v255 = vsub.f32 %v242, %v254
    %v256 = vmul.f32 %v255, %v255
    %v257 = vsel %vm123, %v256, 0.0
    %258 = vadd.xlane.f32.xlu0 %v257
    %v259 = vpop.xlane.xlu0 %258
    %v260 = vsel %vm41, %v256, 0.0
    %v261 = vsel %vm123, %v260, 0.0
    %262 = vadd.xlane.f32.xlu0 %v261
    %v263 = vpop.xlane.xlu0 %262
    %v264 = vsub.f32 %v259, %v263
    %v265 = vsel %vm41, %v263, %v264
    %v266 = vmul.f32 %v265, 0.03125
    %v267 = vadd.f32 %v266, 1e-05
    %v268 = vrsqrt.pop %v267
    %v269 = vmul.f32 %v255, %v268
    %v270 = vlaneseq
    %v271 = vshrl.u32 %v270, 7
    %v272 = vsub.s32 3, %v271
    %v273 = vrot.slane %v38, %v272
    %v274 = vmul.f32 %v269, %v273
    %v275 = vlaneseq
    %v276 = vshrl.u32 %v275, 7
    %v277 = vsub.s32 5, %v276
    %v278 = vrot.slane %v38, %v277
    %v279 = vadd.f32 %v274, %v278
    %v280 = vmax.f32 %v279, 0.0
    %v281 = vld [vmem:[%s4] sm:$0xff]
    %v282 = vld [vmem:[%s4 + $0x8] sm:$0xff]
    %v283 = vld [vmem:[%s4 + $0x10] sm:$0xff]
    %v284 = vld [vmem:[%s4 + $0x18] sm:$0xff]
    %v285 = vld [vmem:[%s4 + $0x20] sm:$0xff]
    %v286 = vld [vmem:[%s4 + $0x28] sm:$0xff]
    %v287 = vld [vmem:[%s4 + $0x30] sm:$0xff]
    %v288 = vld [vmem:[%s4 + $0x38] sm:$0xff]
    %v289 = vld [vmem:[%s5] sm:$0x1]
    %v291 = vlaneseq
    %v292 = vshrl.u32 %v291, 7
    %v293 = vsub.s32 0, %v292
    %v294 = vrot.slane %v289, %v293
    %v297 = vsel %vm123, %v280, 0
    %299 = vmatprep.subr.mxu0 0.0
    %300 = vmatpush1.msra.mxu0 %v281
    %301 = vmatprep.subr.mxu0 0.0
    %302 = vmatpush1.msra.mxu0 %v282
    %303 = vmatprep.subr.mxu0 0.0
    %304 = vmatpush1.msra.mxu0 %v283
    %305 = vmatprep.subr.mxu0 0.0
    %306 = vmatpush1.msra.mxu0 %v284
    %307 = vmatprep.subr.mxu0 0.0
    %308 = vmatpush1.msra.mxu0 %v285
    %309 = vmatprep.subr.mxu0 0.0
    %310 = vmatpush1.msra.mxu0 %v286
    %311 = vmatprep.subr.mxu0 0.0
    %312 = vmatpush1.msra.mxu0 %v287
    %313 = vmatprep.subr.mxu0 0.0
    %314 = vmatpush1.msra.mxu0 %v288
    %315 = vmatprep.subr.mxu0 0.0
    %316 = vmatpush1.msra.mxu0 0.0
    %317 = vmatprep.subr.mxu0 0.0
    %318 = vmatpush1.msra.mxu0 0.0
    %319 = vmatprep.subr.mxu0 0.0
    %320 = vmatpush1.msra.mxu0 0.0
    %321 = vmatprep.subr.mxu0 0.0
    %322 = vmatpush1.msra.mxu0 0.0
    %323 = vmatprep.subr.mxu0 0.0
    %324 = vmatpush1.msra.mxu0 0.0
    %325 = vmatprep.subr.mxu0 0.0
    %326 = vmatpush1.msra.mxu0 0.0
    %327 = vmatprep.subr.mxu0 0.0
    %328 = vmatpush1.msra.mxu0 0.0
    %329 = vmatprep.subr.mxu0 0.0
    %330 = vmatpush1.msra.mxu0 0.0
    %331 = vmatprep.subr.mxu0 0.0
    %332 = vmatpush1.msra.mxu0 0.0
    %333 = vmatprep.subr.mxu0 0.0
    %334 = vmatpush1.msra.mxu0 0.0
    %335 = vmatprep.subr.mxu0 0.0
    %336 = vmatpush1.msra.mxu0 0.0
    %337 = vmatprep.subr.mxu0 0.0
    %338 = vmatpush1.msra.mxu0 0.0
    %339 = vmatprep.subr.mxu0 0.0
    %340 = vmatpush1.msra.mxu0 0.0
    %341 = vmatprep.subr.mxu0 0.0
    %342 = vmatpush1.msra.mxu0 0.0
    %343 = vmatprep.subr.mxu0 0.0
    %344 = vmatpush1.msra.mxu0 0.0
    %345 = vmatprep.subr.mxu0 0.0
    %346 = vmatpush1.msra.mxu0 0.0
    %347 = vmatprep.subr.mxu0 0.0
    %348 = vmatpush1.msra.mxu0 0.0
    %349 = vmatprep.subr.mxu0 0.0
    %350 = vmatpush1.msra.mxu0 0.0
    %351 = vmatprep.subr.mxu0 0.0
    %352 = vmatpush1.msra.mxu0 0.0
    %353 = vmatprep.subr.mxu0 0.0
    %354 = vmatpush1.msra.mxu0 0.0
    %355 = vmatprep.subr.mxu0 0.0
    %356 = vmatpush1.msra.mxu0 0.0
    %357 = vmatprep.subr.mxu0 0.0
    %358 = vmatpush1.msra.mxu0 0.0
    %359 = vmatprep.subr.mxu0 0.0
    %360 = vmatpush1.msra.mxu0 0.0
    %361 = vmatprep.subr.mxu0 0.0
    %362 = vmatpush1.msra.mxu0 0.0
    %363 = vmatprep.mubr.f32.mxu0 0.0
    %364 = vmatmul.mubr.f32.gmra.mrb[0].mxu0 %v297
    %v365 = vpop.f32.mrb[0].mxu0
    %v366 = vadd.f32 %v294, %v365
    %v367 = vpop.f32.mrb[0].mxu0
    %368 = vdwg.mxu0
    %vm369 = vcmask 15360
    %370 = vst.msk [vmem:[%s6] sm:$0xff] %vm369, %v366
    // Predicated region
    $region30: #{double_q_forward.1} parent=1 // pred_check
      _
    $region31: #{double_q_forward.1} parent=1 // pred_check_branch
      %372 = sbr.rel (0) target = $region33
    $region32: #{double_q_forward.1} parent=1 // pred_region
      _
    $region33: #{double_q_forward.1} parent=1 // pred_fallthru
      _
    // Predicated region
    $region34: #{double_q_forward.1} parent=1 // pred_check
      _
    $region35: #{double_q_forward.1} parent=1 // pred_check_branch
      %374 = sbr.rel (0) target = $region37
    $region36: #{double_q_forward.1} parent=1 // pred_region
      _
    $region37: #{double_q_forward.1} parent=1 // pred_fallthru
      _
    %375 = vsyncpa [#allocation3], 1

</llo_original>
